<compile_context>
chip_gen: v5e
topology: v5e:2x2
jax: 0.10.0
libtpu: 0.0.40
codegen_flags: <defaults>
</compile_context>

<pallas_src>
import jax
import jax.numpy as jnp
import numpy as np
from jax.experimental import pallas as pl
from jax.experimental.pallas import tpu as pltpu


def _motion_encoder_kernel(
    x_ref,       # (B, T, 2H) input sequence, batch-first
    eps_ref,     # (B, T, S)  gaussian noise for reparameterization
    wih_ref,     # (2H, H)    W_ih^T               (matmul dtype)
    whh_ref,     # (H, H)     W_hh^T               (matmul dtype)
    brnn_ref,    # (1, H)     b_ih + b_hh          (f32)
    wout_ref,    # (H, 2S)    [W_mean | W_logvar]^T (matmul dtype)
    bout_ref,    # (1, 2S)    [b_mean | b_logvar]  (f32)
    mean_ref,    # (B, T, S)  out
    logvar_ref,  # (B, T, S)  out
    sample_ref,  # (B, T, S)  out
    feats_ref,   # (B, T, H)  VMEM scratch: RNN features for the batched heads
):
    B, T, F = x_ref.shape
    H = whh_ref.shape[0]
    S = eps_ref.shape[2]
    mm_dtype = wih_ref.dtype  # bf16 on v6e/v7x if requested, else f32

    # ---- hoisted input projection: one MXU call over all B*T rows ----------
    x2 = x_ref[...].reshape(B * T, F).astype(mm_dtype)
    pre_x = (
        jnp.dot(x2, wih_ref[...], preferred_element_type=jnp.float32)
        + brnn_ref[...]
    ).reshape(B, T, H)                                    # (B, T, H) f32

    # ---- serial tanh recurrence: only the HxH matmul stays in the loop -----
    whh = whh_ref[...]
    h = jnp.zeros((B, H), dtype=jnp.float32)
    for t in range(T):  # T is static -> fully unrolled, static slices/stores
        h = jnp.tanh(
            pre_x[:, t, :]
            + jnp.dot(h.astype(mm_dtype), whh, preferred_element_type=jnp.float32)
        )
        feats_ref[:, t, :] = h

    # ---- batched output heads: one fused matmul for [mean | logvar] --------
    feats2 = feats_ref[...].reshape(B * T, H).astype(mm_dtype)
    z = (
        jnp.dot(feats2, wout_ref[...], preferred_element_type=jnp.float32)
        + bout_ref[...]
    )                                                     # (B*T, 2S) f32
    z_mean = z[:, :S]
    z_logvar = z[:, S:]
    eps = eps_ref[...].reshape(B * T, S).astype(jnp.float32)
    z_sample = z_mean + eps * jnp.exp(0.5 * z_logvar)

    mean_ref[...] = z_mean.reshape(B, T, S).astype(mean_ref.dtype)
    logvar_ref[...] = z_logvar.reshape(B, T, S).astype(logvar_ref.dtype)
    sample_ref[...] = z_sample.reshape(B, T, S).astype(sample_ref.dtype)


def lstm_motion_encoder_forward(lstm_out, eps, params, *, matmul_dtype=jnp.float32):
    """lstm_out: (B, T, 2H) batch-first, eps: (B, T, S).
    Returns (z_mean, z_logvar, z_sample), each (B, T, S) float32."""
    B, T, F = lstm_out.shape
    H = params["w_hh_t"].shape[0]
    S = params["w_mean_t"].shape[1]
    assert F == 2 * H
    assert eps.shape == (B, T, S)

    # Fuse parameters once in the wrapper (fewer refs, fewer in-kernel adds).
    w_ih_t = params["w_ih_t"].astype(matmul_dtype)                       # (2H, H)
    w_hh_t = params["w_hh_t"].astype(matmul_dtype)                       # (H, H)
    b_rnn = (params["b_ih"] + params["b_hh"]).astype(jnp.float32)        # (1, H)
    w_out_t = jnp.concatenate(
        [params["w_mean_t"], params["w_logvar_t"]], axis=1
    ).astype(matmul_dtype)                                               # (H, 2S)
    b_out = jnp.concatenate(
        [params["b_mean"], params["b_logvar"]], axis=1
    ).astype(jnp.float32)                                                # (1, 2S)

    out_shapes = tuple(
        jax.ShapeDtypeStruct((B, T, S), jnp.float32) for _ in range(3)
    )
    vmem_spec = pl.BlockSpec(memory_space=pltpu.MemorySpace.VMEM)

    kernel = pl.pallas_call(
        _motion_encoder_kernel,
        out_shape=out_shapes,
        # No grid: single invocation, all operands/outputs VMEM-resident; the
        # time loop runs (unrolled) inside the kernel.
        in_specs=[vmem_spec] * 7,
        out_specs=[vmem_spec] * 3,
        scratch_shapes=[pltpu.VMEM((B, T, H), jnp.float32)],
    )
    return kernel(lstm_out, eps, w_ih_t, w_hh_t, b_rnn, w_out_t, b_out)


def init_params(key, lstm_hidden_dim, state_dim):
    """Deterministic init mimicking PyTorch default uniform(-1/sqrt(fan), 1/sqrt(fan))."""
    H, S = lstm_hidden_dim, state_dim
    F = 2 * H
    ks = jax.random.split(key, 8)
    u = lambda k, shape, bound: jax.random.uniform(
        k, shape, jnp.float32, minval=-bound, maxval=bound
    )
    rnn_b = 1.0 / np.sqrt(H)
    lin_b = 1.0 / np.sqrt(H)
    return {
        # stored pre-transposed for x @ W^T style matmuls
        "w_ih_t": u(ks[0], (F, H), rnn_b),
        "w_hh_t": u(ks[1], (H, H), rnn_b),
        "b_ih": u(ks[2], (1, H), rnn_b),
        "b_hh": u(ks[3], (1, H), rnn_b),
        "w_mean_t": u(ks[4], (H, S), lin_b),
        "b_mean": u(ks[5], (1, S), lin_b),
        "w_logvar_t": u(ks[6], (H, S), lin_b),
        "b_logvar": u(ks[7], (1, S), lin_b),
    }


def reference_forward(lstm_out, eps, params):
    """Pure-JAX reference (lax.scan) for correctness checking."""
    def step(h, x_t):
        pre = x_t @ params["w_ih_t"] + params["b_ih"] + h @ params["w_hh_t"] + params["b_hh"]
        h_new = jnp.tanh(pre)
        return h_new, h_new

    B, T, F = lstm_out.shape
    H = params["w_hh_t"].shape[0]
    x_tbf = jnp.transpose(lstm_out, (1, 0, 2))
    h0 = jnp.zeros((B, H), jnp.float32)
    _, feats = jax.lax.scan(step, h0, x_tbf)          # (T, B, H)
    feats = jnp.transpose(feats, (1, 0, 2))           # (B, T, H)
    z_mean = feats @ params["w_mean_t"] + params["b_mean"]
    z_logvar = feats @ params["w_logvar_t"] + params["b_logvar"]
    z_sample = z_mean + eps * jnp.exp(0.5 * z_logvar)
    return z_mean, z_logvar, z_sample


if __name__ == "__main__":
    lstm_hidden_dim = 32
    state_dim = 16
    B, T = 2, 8

    key = jax.random.PRNGKey(0)
    k_params, k_x, k_eps = jax.random.split(key, 3)

    params = init_params(k_params, lstm_hidden_dim, state_dim)
    lstm_out = jax.random.normal(k_x, (B, T, 2 * lstm_hidden_dim), jnp.float32)
    # reparameterize(random_sampling=True): eps ~ N(0,1) drawn outside the
    # kernel from a deterministic key and passed in.
    eps = jax.random.normal(k_eps, (B, T, state_dim), jnp.float32)

    z_mean, z_logvar, z_sample = lstm_motion_encoder_forward(lstm_out, eps, params)
    jax.block_until_ready((z_mean, z_logvar, z_sample))

    ref_mean, ref_logvar, ref_sample = reference_forward(lstm_out, eps, params)
    np.testing.assert_allclose(np.asarray(z_mean), np.asarray(ref_mean), rtol=1e-5, atol=1e-5)
    np.testing.assert_allclose(np.asarray(z_logvar), np.asarray(ref_logvar), rtol=1e-5, atol=1e-5)
    np.testing.assert_allclose(np.asarray(z_sample), np.asarray(ref_sample), rtol=1e-5, atol=1e-5)

    print("KERNEL_OK")
</pallas_src>

<mosaic_0001>
module attributes {stable_mosaic.version = 11 : i64} {
  func.func @_motion_encoder_kernel(%arg0: memref<2x8x64xf32, #tpu.memory_space<vmem>>, %arg1: memref<2x8x16xf32, #tpu.memory_space<vmem>>, %arg2: memref<64x32xf32, #tpu.memory_space<vmem>>, %arg3: memref<32x32xf32, #tpu.memory_space<vmem>>, %arg4: memref<1x32xf32, #tpu.memory_space<vmem>>, %arg5: memref<32x32xf32, #tpu.memory_space<vmem>>, %arg6: memref<1x32xf32, #tpu.memory_space<vmem>>, %arg7: memref<2x8x16xf32, #tpu.memory_space<vmem>>, %arg8: memref<2x8x16xf32, #tpu.memory_space<vmem>>, %arg9: memref<2x8x16xf32, #tpu.memory_space<vmem>>, %arg10: memref<2x8x32xf32, #tpu.memory_space<vmem>>) attributes {dimension_semantics = [], scalar_prefetch = 0 : i64, scratch_operands = 1 : i64, tpu.core_type = #tpu.core_type<tc>} {
    %c0 = arith.constant 0 : index
    %c0_0 = arith.constant 0 : index
    %c0_1 = arith.constant 0 : index
    %0 = vector.load %arg0[%c0, %c0_0, %c0_1] : memref<2x8x64xf32, #tpu.memory_space<vmem>>, vector<2x8x64xf32>
    %1 = vector.shape_cast %0 : vector<2x8x64xf32> to vector<16x64xf32>
    %c0_2 = arith.constant 0 : index
    %c0_3 = arith.constant 0 : index
    %2 = vector.load %arg2[%c0_2, %c0_3] : memref<64x32xf32, #tpu.memory_space<vmem>>, vector<64x32xf32>
    %cst = arith.constant dense<0.000000e+00> : vector<16x32xf32>
    %3 = tpu.matmul %1, %2, %cst {dimension_numbers = #tpu.dot_dimension_numbers<[1], [0], [0], [1], [0, 0, 1, 1], [], []>} : vector<16x64xf32>, vector<64x32xf32>, vector<16x32xf32> -> vector<16x32xf32>
    %c0_4 = arith.constant 0 : index
    %c0_5 = arith.constant 0 : index
    %4 = vector.load %arg4[%c0_4, %c0_5] : memref<1x32xf32, #tpu.memory_space<vmem>>, vector<1x32xf32>
    %5 = vector.broadcast %4 : vector<1x32xf32> to vector<16x32xf32>
    %6 = arith.addf %3, %5 : vector<16x32xf32>
    %7 = vector.shape_cast %6 : vector<16x32xf32> to vector<2x8x32xf32>
    %c0_6 = arith.constant 0 : index
    %c0_7 = arith.constant 0 : index
    %8 = vector.load %arg3[%c0_6, %c0_7] : memref<32x32xf32, #tpu.memory_space<vmem>>, vector<32x32xf32>
    %cst_8 = arith.constant 0.000000e+00 : f32
    %9 = vector.broadcast %cst_8 : f32 to vector<2x32xf32>
    %10 = vector.extract_strided_slice %7 {offsets = [0, 0, 0], sizes = [2, 1, 32], strides = [1, 1, 1]} : vector<2x8x32xf32> to vector<2x1x32xf32>
    %11 = vector.shape_cast %10 : vector<2x1x32xf32> to vector<2x32xf32>
    %cst_9 = arith.constant dense<0.000000e+00> : vector<2x32xf32>
    %12 = tpu.matmul %9, %8, %cst_9 {dimension_numbers = #tpu.dot_dimension_numbers<[1], [0], [0], [1], [0, 0, 1, 1], [], []>} : vector<2x32xf32>, vector<32x32xf32>, vector<2x32xf32> -> vector<2x32xf32>
    %13 = arith.addf %11, %12 : vector<2x32xf32>
    %14 = math.tanh %13 : vector<2x32xf32>
    %c0_10 = arith.constant 0 : index
    %c0_11 = arith.constant 0 : index
    %c0_12 = arith.constant 0 : index
    %15 = vector.load %arg10[%c0_10, %c0_11, %c0_12] : memref<2x8x32xf32, #tpu.memory_space<vmem>>, vector<2x1x32xf32>
    %16 = vector.shape_cast %15 : vector<2x1x32xf32> to vector<2x32xf32>
    %17 = vector.shape_cast %14 : vector<2x32xf32> to vector<2x1x32xf32>
    tpu.vector_store %arg10[%c0_10, %c0_11, %c0_12], %17 {strides = array<i32>} : memref<2x8x32xf32, #tpu.memory_space<vmem>>, vector<2x1x32xf32>,
    %18 = vector.extract_strided_slice %7 {offsets = [0, 1, 0], sizes = [2, 1, 32], strides = [1, 1, 1]} : vector<2x8x32xf32> to vector<2x1x32xf32>
    %19 = vector.shape_cast %18 : vector<2x1x32xf32> to vector<2x32xf32>
    %cst_13 = arith.constant dense<0.000000e+00> : vector<2x32xf32>
    %20 = tpu.matmul %14, %8, %cst_13 {dimension_numbers = #tpu.dot_dimension_numbers<[1], [0], [0], [1], [0, 0, 1, 1], [], []>} : vector<2x32xf32>, vector<32x32xf32>, vector<2x32xf32> -> vector<2x32xf32>
    %21 = arith.addf %19, %20 : vector<2x32xf32>
    %22 = math.tanh %21 : vector<2x32xf32>
    %c0_14 = arith.constant 0 : index
    %c1 = arith.constant 1 : index
    %c0_15 = arith.constant 0 : index
    %23 = vector.load %arg10[%c0_14, %c1, %c0_15] : memref<2x8x32xf32, #tpu.memory_space<vmem>>, vector<2x1x32xf32>
    %24 = vector.shape_cast %23 : vector<2x1x32xf32> to vector<2x32xf32>
    %25 = vector.shape_cast %22 : vector<2x32xf32> to vector<2x1x32xf32>
    tpu.vector_store %arg10[%c0_14, %c1, %c0_15], %25 {strides = array<i32>} : memref<2x8x32xf32, #tpu.memory_space<vmem>>, vector<2x1x32xf32>,
    %26 = vector.extract_strided_slice %7 {offsets = [0, 2, 0], sizes = [2, 1, 32], strides = [1, 1, 1]} : vector<2x8x32xf32> to vector<2x1x32xf32>
    %27 = vector.shape_cast %26 : vector<2x1x32xf32> to vector<2x32xf32>
    %cst_16 = arith.constant dense<0.000000e+00> : vector<2x32xf32>
    %28 = tpu.matmul %22, %8, %cst_16 {dimension_numbers = #tpu.dot_dimension_numbers<[1], [0], [0], [1], [0, 0, 1, 1], [], []>} : vector<2x32xf32>, vector<32x32xf32>, vector<2x32xf32> -> vector<2x32xf32>
    %29 = arith.addf %27, %28 : vector<2x32xf32>
    %30 = math.tanh %29 : vector<2x32xf32>
    %c0_17 = arith.constant 0 : index
    %c2 = arith.constant 2 : index
    %c0_18 = arith.constant 0 : index
    %31 = vector.load %arg10[%c0_17, %c2, %c0_18] : memref<2x8x32xf32, #tpu.memory_space<vmem>>, vector<2x1x32xf32>
    %32 = vector.shape_cast %31 : vector<2x1x32xf32> to vector<2x32xf32>
    %33 = vector.shape_cast %30 : vector<2x32xf32> to vector<2x1x32xf32>
    tpu.vector_store %arg10[%c0_17, %c2, %c0_18], %33 {strides = array<i32>} : memref<2x8x32xf32, #tpu.memory_space<vmem>>, vector<2x1x32xf32>,
    %34 = vector.extract_strided_slice %7 {offsets = [0, 3, 0], sizes = [2, 1, 32], strides = [1, 1, 1]} : vector<2x8x32xf32> to vector<2x1x32xf32>
    %35 = vector.shape_cast %34 : vector<2x1x32xf32> to vector<2x32xf32>
    %cst_19 = arith.constant dense<0.000000e+00> : vector<2x32xf32>
    %36 = tpu.matmul %30, %8, %cst_19 {dimension_numbers = #tpu.dot_dimension_numbers<[1], [0], [0], [1], [0, 0, 1, 1], [], []>} : vector<2x32xf32>, vector<32x32xf32>, vector<2x32xf32> -> vector<2x32xf32>
    %37 = arith.addf %35, %36 : vector<2x32xf32>
    %38 = math.tanh %37 : vector<2x32xf32>
    %c0_20 = arith.constant 0 : index
    %c3 = arith.constant 3 : index
    %c0_21 = arith.constant 0 : index
    %39 = vector.load %arg10[%c0_20, %c3, %c0_21] : memref<2x8x32xf32, #tpu.memory_space<vmem>>, vector<2x1x32xf32>
    %40 = vector.shape_cast %39 : vector<2x1x32xf32> to vector<2x32xf32>
    %41 = vector.shape_cast %38 : vector<2x32xf32> to vector<2x1x32xf32>
    tpu.vector_store %arg10[%c0_20, %c3, %c0_21], %41 {strides = array<i32>} : memref<2x8x32xf32, #tpu.memory_space<vmem>>, vector<2x1x32xf32>,
    %42 = vector.extract_strided_slice %7 {offsets = [0, 4, 0], sizes = [2, 1, 32], strides = [1, 1, 1]} : vector<2x8x32xf32> to vector<2x1x32xf32>
    %43 = vector.shape_cast %42 : vector<2x1x32xf32> to vector<2x32xf32>
    %cst_22 = arith.constant dense<0.000000e+00> : vector<2x32xf32>
    %44 = tpu.matmul %38, %8, %cst_22 {dimension_numbers = #tpu.dot_dimension_numbers<[1], [0], [0], [1], [0, 0, 1, 1], [], []>} : vector<2x32xf32>, vector<32x32xf32>, vector<2x32xf32> -> vector<2x32xf32>
    %45 = arith.addf %43, %44 : vector<2x32xf32>
    %46 = math.tanh %45 : vector<2x32xf32>
    %c0_23 = arith.constant 0 : index
    %c4 = arith.constant 4 : index
    %c0_24 = arith.constant 0 : index
    %47 = vector.load %arg10[%c0_23, %c4, %c0_24] : memref<2x8x32xf32, #tpu.memory_space<vmem>>, vector<2x1x32xf32>
    %48 = vector.shape_cast %47 : vector<2x1x32xf32> to vector<2x32xf32>
    %49 = vector.shape_cast %46 : vector<2x32xf32> to vector<2x1x32xf32>
    tpu.vector_store %arg10[%c0_23, %c4, %c0_24], %49 {strides = array<i32>} : memref<2x8x32xf32, #tpu.memory_space<vmem>>, vector<2x1x32xf32>,
    %50 = vector.extract_strided_slice %7 {offsets = [0, 5, 0], sizes = [2, 1, 32], strides = [1, 1, 1]} : vector<2x8x32xf32> to vector<2x1x32xf32>
    %51 = vector.shape_cast %50 : vector<2x1x32xf32> to vector<2x32xf32>
    %cst_25 = arith.constant dense<0.000000e+00> : vector<2x32xf32>
    %52 = tpu.matmul %46, %8, %cst_25 {dimension_numbers = #tpu.dot_dimension_numbers<[1], [0], [0], [1], [0, 0, 1, 1], [], []>} : vector<2x32xf32>, vector<32x32xf32>, vector<2x32xf32> -> vector<2x32xf32>
    %53 = arith.addf %51, %52 : vector<2x32xf32>
    %54 = math.tanh %53 : vector<2x32xf32>
    %c0_26 = arith.constant 0 : index
    %c5 = arith.constant 5 : index
    %c0_27 = arith.constant 0 : index
    %55 = vector.load %arg10[%c0_26, %c5, %c0_27] : memref<2x8x32xf32, #tpu.memory_space<vmem>>, vector<2x1x32xf32>
    %56 = vector.shape_cast %55 : vector<2x1x32xf32> to vector<2x32xf32>
    %57 = vector.shape_cast %54 : vector<2x32xf32> to vector<2x1x32xf32>
    tpu.vector_store %arg10[%c0_26, %c5, %c0_27], %57 {strides = array<i32>} : memref<2x8x32xf32, #tpu.memory_space<vmem>>, vector<2x1x32xf32>,
    %58 = vector.extract_strided_slice %7 {offsets = [0, 6, 0], sizes = [2, 1, 32], strides = [1, 1, 1]} : vector<2x8x32xf32> to vector<2x1x32xf32>
    %59 = vector.shape_cast %58 : vector<2x1x32xf32> to vector<2x32xf32>
    %cst_28 = arith.constant dense<0.000000e+00> : vector<2x32xf32>
    %60 = tpu.matmul %54, %8, %cst_28 {dimension_numbers = #tpu.dot_dimension_numbers<[1], [0], [0], [1], [0, 0, 1, 1], [], []>} : vector<2x32xf32>, vector<32x32xf32>, vector<2x32xf32> -> vector<2x32xf32>
    %61 = arith.addf %59, %60 : vector<2x32xf32>
    %62 = math.tanh %61 : vector<2x32xf32>
    %c0_29 = arith.constant 0 : index
    %c6 = arith.constant 6 : index
    %c0_30 = arith.constant 0 : index
    %63 = vector.load %arg10[%c0_29, %c6, %c0_30] : memref<2x8x32xf32, #tpu.memory_space<vmem>>, vector<2x1x32xf32>
    %64 = vector.shape_cast %63 : vector<2x1x32xf32> to vector<2x32xf32>
    %65 = vector.shape_cast %62 : vector<2x32xf32> to vector<2x1x32xf32>
    tpu.vector_store %arg10[%c0_29, %c6, %c0_30], %65 {strides = array<i32>} : memref<2x8x32xf32, #tpu.memory_space<vmem>>, vector<2x1x32xf32>,
    %66 = vector.extract_strided_slice %7 {offsets = [0, 7, 0], sizes = [2, 1, 32], strides = [1, 1, 1]} : vector<2x8x32xf32> to vector<2x1x32xf32>
    %67 = vector.shape_cast %66 : vector<2x1x32xf32> to vector<2x32xf32>
    %cst_31 = arith.constant dense<0.000000e+00> : vector<2x32xf32>
    %68 = tpu.matmul %62, %8, %cst_31 {dimension_numbers = #tpu.dot_dimension_numbers<[1], [0], [0], [1], [0, 0, 1, 1], [], []>} : vector<2x32xf32>, vector<32x32xf32>, vector<2x32xf32> -> vector<2x32xf32>
    %69 = arith.addf %67, %68 : vector<2x32xf32>
    %70 = math.tanh %69 : vector<2x32xf32>
    %c0_32 = arith.constant 0 : index
    %c7 = arith.constant 7 : index
    %c0_33 = arith.constant 0 : index
    %71 = vector.load %arg10[%c0_32, %c7, %c0_33] : memref<2x8x32xf32, #tpu.memory_space<vmem>>, vector<2x1x32xf32>
    %72 = vector.shape_cast %71 : vector<2x1x32xf32> to vector<2x32xf32>
    %73 = vector.shape_cast %70 : vector<2x32xf32> to vector<2x1x32xf32>
    tpu.vector_store %arg10[%c0_32, %c7, %c0_33], %73 {strides = array<i32>} : memref<2x8x32xf32, #tpu.memory_space<vmem>>, vector<2x1x32xf32>,
    %c0_34 = arith.constant 0 : index
    %c0_35 = arith.constant 0 : index
    %c0_36 = arith.constant 0 : index
    %74 = vector.load %arg10[%c0_34, %c0_35, %c0_36] : memref<2x8x32xf32, #tpu.memory_space<vmem>>, vector<2x8x32xf32>
    %75 = vector.shape_cast %74 : vector<2x8x32xf32> to vector<16x32xf32>
    %c0_37 = arith.constant 0 : index
    %c0_38 = arith.constant 0 : index
    %76 = vector.load %arg5[%c0_37, %c0_38] : memref<32x32xf32, #tpu.memory_space<vmem>>, vector<32x32xf32>
    %cst_39 = arith.constant dense<0.000000e+00> : vector<16x32xf32>
    %77 = tpu.matmul %75, %76, %cst_39 {dimension_numbers = #tpu.dot_dimension_numbers<[1], [0], [0], [1], [0, 0, 1, 1], [], []>} : vector<16x32xf32>, vector<32x32xf32>, vector<16x32xf32> -> vector<16x32xf32>
    %c0_40 = arith.constant 0 : index
    %c0_41 = arith.constant 0 : index
    %78 = vector.load %arg6[%c0_40, %c0_41] : memref<1x32xf32, #tpu.memory_space<vmem>>, vector<1x32xf32>
    %79 = vector.broadcast %78 : vector<1x32xf32> to vector<16x32xf32>
    %80 = arith.addf %77, %79 : vector<16x32xf32>
    %81 = vector.extract_strided_slice %80 {offsets = [0, 0], sizes = [16, 16], strides = [1, 1]} : vector<16x32xf32> to vector<16x16xf32>
    %82 = vector.extract_strided_slice %80 {offsets = [0, 16], sizes = [16, 16], strides = [1, 1]} : vector<16x32xf32> to vector<16x16xf32>
    %c0_42 = arith.constant 0 : index
    %c0_43 = arith.constant 0 : index
    %c0_44 = arith.constant 0 : index
    %83 = vector.load %arg1[%c0_42, %c0_43, %c0_44] : memref<2x8x16xf32, #tpu.memory_space<vmem>>, vector<2x8x16xf32>
    %84 = vector.shape_cast %83 : vector<2x8x16xf32> to vector<16x16xf32>
    %cst_45 = arith.constant 5.000000e-01 : f32
    %85 = vector.broadcast %cst_45 : f32 to vector<16x16xf32>
    %86 = arith.mulf %85, %82 : vector<16x16xf32>
    %87 = math.exp %86 : vector<16x16xf32>
    %88 = arith.mulf %84, %87 : vector<16x16xf32>
    %89 = arith.addf %81, %88 : vector<16x16xf32>
    %90 = vector.shape_cast %81 : vector<16x16xf32> to vector<2x8x16xf32>
    %c0_46 = arith.constant 0 : index
    %c0_47 = arith.constant 0 : index
    %c0_48 = arith.constant 0 : index
    %91 = vector.load %arg7[%c0_46, %c0_47, %c0_48] : memref<2x8x16xf32, #tpu.memory_space<vmem>>, vector<2x8x16xf32>
    tpu.vector_store %arg7[%c0_46, %c0_47, %c0_48], %90 {strides = array<i32>} : memref<2x8x16xf32, #tpu.memory_space<vmem>>, vector<2x8x16xf32>,
    %92 = vector.shape_cast %82 : vector<16x16xf32> to vector<2x8x16xf32>
    %c0_49 = arith.constant 0 : index
    %c0_50 = arith.constant 0 : index
    %c0_51 = arith.constant 0 : index
    %93 = vector.load %arg8[%c0_49, %c0_50, %c0_51] : memref<2x8x16xf32, #tpu.memory_space<vmem>>, vector<2x8x16xf32>
    tpu.vector_store %arg8[%c0_49, %c0_50, %c0_51], %92 {strides = array<i32>} : memref<2x8x16xf32, #tpu.memory_space<vmem>>, vector<2x8x16xf32>,
    %94 = vector.shape_cast %89 : vector<16x16xf32> to vector<2x8x16xf32>
    %c0_52 = arith.constant 0 : index
    %c0_53 = arith.constant 0 : index
    %c0_54 = arith.constant 0 : index
    %95 = vector.load %arg9[%c0_52, %c0_53, %c0_54] : memref<2x8x16xf32, #tpu.memory_space<vmem>>, vector<2x8x16xf32>
    tpu.vector_store %arg9[%c0_52, %c0_53, %c0_54], %94 {strides = array<i32>} : memref<2x8x16xf32, #tpu.memory_space<vmem>>, vector<2x8x16xf32>,
    return
  }
}

</mosaic_0001>

<llo_original>
// kernel: tpu_custom_call.1
$region0: #{tpu_custom_call.1}
  #allocation0 [shape = 'u32[]', space=smem, size = 0x4, offset = 0x4, fixed_abs, tag = 'smem constant byte address 0x4 - core index']
  #allocation1 [shape = 'u32[72,128]{1,0:T(1,128)}', space=vmem, size = 0x9000, scoped, tag = 'internal scratch']
  #allocation2 [shape = 'f32[2,8,32]{2,1,0:T(8,128)}', space=vmem, size = 0x2000, scoped, tag = 'scratch operand']
  %s0 = inlined_call_operand.vmem [shape: f32[2,8,64], index: 0, kind: input, shape index: {}]
  %s1 = inlined_call_operand.vmem [shape: f32[2,8,16], index: 1, kind: input, shape index: {}]
  %s2 = inlined_call_operand.vmem [shape: f32[64,32], index: 2, kind: input, shape index: {}]
  %s3 = inlined_call_operand.vmem [shape: f32[32,32], index: 3, kind: input, shape index: {}]
  %s4 = inlined_call_operand.vmem [shape: f32[1,32], index: 4, kind: input, shape index: {}]
  %s5 = inlined_call_operand.vmem [shape: f32[32,32], index: 5, kind: input, shape index: {}]
  %s6 = inlined_call_operand.vmem [shape: f32[1,32], index: 6, kind: input, shape index: {}]
  %s7 = inlined_call_operand.hbm [shape: f32[2,8,16], index: 7, kind: output, shape index: {0}]
  %s8 = inlined_call_operand.hbm [shape: f32[2,8,16], index: 8, kind: output, shape index: {1}]
  %s9 = inlined_call_operand.hbm [shape: f32[2,8,16], index: 9, kind: output, shape index: {2}]
  %10 = xla_tuple %s7, %s8, %s9
  %s11 = sld [smem:[#allocation0]]
  $region54: #{tpu_custom_call.1} parent=0
    _
  %s13 = ssub.s32 1, %s11
  %s14 = scalar_select 0, %s13, %s11
  $region1: #{tpu_custom_call.1} parent=0
    #allocation3 [shape = 'u8[8192]{0}', space=vmem, size = 0x2000, scoped, tag = 'output window, operand 0, single buffered']
    #allocation4 [shape = 's32[1]{0}', space=sflag, size = 0x4, scoped, tag = 'scoped memory for tpu_custom_call.1']
    #allocation5 [shape = 'u8[8192]{0}', space=vmem, size = 0x2000, scoped, tag = 'output window, operand 1, single buffered']
    #allocation6 [shape = 's32[1]{0}', space=sflag, size = 0x4, scoped, tag = 'scoped memory for tpu_custom_call.1']
    #allocation7 [shape = 'u8[8192]{0}', space=vmem, size = 0x2000, scoped, tag = 'output window, operand 2, single buffered']
    %15 = vsyncpa [#allocation4], 0
    %16 = vsyncpa [#allocation6], 0
    // Predicated region
    $region2: #{tpu_custom_call.1} parent=1 // pred_check
      _
    $region3: #{tpu_custom_call.1} parent=1 // pred_check_branch
      %18 = sbr.rel (0) target = $region5
    $region4: #{tpu_custom_call.1} parent=1 // pred_region
      _
    $region5: #{tpu_custom_call.1} parent=1 // pred_fallthru
      _
    // Predicated region
    $region6: #{tpu_custom_call.1} parent=1 // pred_check
      _
    $region7: #{tpu_custom_call.1} parent=1 // pred_check_branch
      %20 = sbr.rel (0) target = $region9
    $region8: #{tpu_custom_call.1} parent=1 // pred_region
      _
    $region9: #{tpu_custom_call.1} parent=1 // pred_fallthru
      _
    // Predicated region
    $region10: #{tpu_custom_call.1} parent=1 // pred_check
      _
    $region11: #{tpu_custom_call.1} parent=1 // pred_check_branch
      %22 = sbr.rel (0) target = $region13
    $region12: #{tpu_custom_call.1} parent=1 // pred_region
      _
    $region13: #{tpu_custom_call.1} parent=1 // pred_fallthru
      _
    // Predicated region
    $region14: #{tpu_custom_call.1} parent=1 // pred_check
      _
    $region15: #{tpu_custom_call.1} parent=1 // pred_check_branch
      %24 = sbr.rel (0) target = $region17
    $region16: #{tpu_custom_call.1} parent=1 // pred_region
      _
    $region17: #{tpu_custom_call.1} parent=1 // pred_fallthru
      _
    // Predicated region
    $region18: #{tpu_custom_call.1} parent=1 // pred_check
      _
    $region19: #{tpu_custom_call.1} parent=1 // pred_check_branch
      %26 = sbr.rel (0) target = $region21
    $region20: #{tpu_custom_call.1} parent=1 // pred_region
      _
    $region21: #{tpu_custom_call.1} parent=1 // pred_fallthru
      _
    // Predicated region
    $region22: #{tpu_custom_call.1} parent=1 // pred_check
      _
    $region23: #{tpu_custom_call.1} parent=1 // pred_check_branch
      %28 = sbr.rel (0) target = $region25
    $region24: #{tpu_custom_call.1} parent=1 // pred_region
      _
    $region25: #{tpu_custom_call.1} parent=1 // pred_fallthru
      _
    // Predicated region
    $region26: #{tpu_custom_call.1} parent=1 // pred_check
      _
    $region27: #{tpu_custom_call.1} parent=1 // pred_check_branch
      %30 = sbr.rel (0) target = $region29
    $region28: #{tpu_custom_call.1} parent=1 // pred_region
      _
    $region29: #{tpu_custom_call.1} parent=1 // pred_fallthru
      _
    %v31 = vld [vmem:[%s0] sm:$0xff]
    %v32 = vld [vmem:[%s0 + $0x8] sm:$0xff]
    %v33 = vld [vmem:[%s2] sm:$0xff]
    %v34 = vld [vmem:[%s2 + $0x8] sm:$0xff]
    %v35 = vld [vmem:[%s2 + $0x10] sm:$0xff]
    %v36 = vld [vmem:[%s2 + $0x18] sm:$0xff]
    %v37 = vld [vmem:[%s2 + $0x20] sm:$0xff]
    %v38 = vld [vmem:[%s2 + $0x28] sm:$0xff]
    %v39 = vld [vmem:[%s2 + $0x30] sm:$0xff]
    %v40 = vld [vmem:[%s2 + $0x38] sm:$0xff]
    %v41 = vld [vmem:[%s4] sm:$0x1]
    %v43 = vperm.slane %v41, 0
    %vm45 = vcmask 523264
    %v47 = vsel %vm45, %v31, 0
    %v50 = vsel %vm45, %v32, 0
    %52 = vmatpush.msra.mxu0 0.0
    %53 = vmatpush.msra.mxu0 0.0
    %54 = vmatpush.msra.mxu0 0.0
    %55 = vmatpush.msra.mxu0 0.0
    %56 = vmatpush.msra.mxu0 0.0
    %57 = vmatpush.msra.mxu0 0.0
    %58 = vmatpush.msra.mxu0 0.0
    %59 = vmatpush.msra.mxu0 0.0
    %60 = vmatpush.msra.mxu0 %v40
    %61 = vmatpush.msra.mxu0 %v39
    %62 = vmatpush.msra.mxu0 %v38
    %63 = vmatpush.msra.mxu0 %v37
    %64 = vmatpush.msra.mxu0 %v36
    %65 = vmatpush.msra.mxu0 %v35
    %66 = vmatpush.msra.mxu0 %v34
    %67 = vmatpush.msra.mxu0 %v33
    %68 = vmatmul.f32.gmra.mxu0 %v47
    %v69 = vpop.f32.mrf.mxu0
    %v70 = vadd.f32 %v43, %v69
    %71 = vmatmul.f32.gmra.mxu0 %v50
    %v72 = vpop.f32.mrf.mxu0
    %v73 = vadd.f32 %v43, %v72
    %74 = vdwg.mxu0
    %v75 = vld [vmem:[%s3] sm:$0xff]
    %v76 = vld [vmem:[%s3 + $0x8] sm:$0xff]
    %v77 = vld [vmem:[%s3 + $0x10] sm:$0xff]
    %v78 = vld [vmem:[%s3 + $0x18] sm:$0xff]
    %vm79 = vcmask 261120
    %v81 = vsel %vm79, 0.0, 0
    %83 = vmatpush.msra.mxu0 0.0
    %84 = vmatpush.msra.mxu0 0.0
    %85 = vmatpush.msra.mxu0 0.0
    %86 = vmatpush.msra.mxu0 0.0
    %87 = vmatpush.msra.mxu0 0.0
    %88 = vmatpush.msra.mxu0 0.0
    %89 = vmatpush.msra.mxu0 0.0
    %90 = vmatpush.msra.mxu0 0.0
    %91 = vmatpush.msra.mxu0 0.0
    %92 = vmatpush.msra.mxu0 0.0
    %93 = vmatpush.msra.mxu0 0.0
    %94 = vmatpush.msra.mxu0 0.0
    %95 = vmatpush.msra.mxu0 %v78
    %96 = vmatpush.msra.mxu0 %v77
    %97 = vmatpush.msra.mxu0 %v76
    %98 = vmatpush.msra.mxu0 %v75
    %99 = vmatmul.f32.gmra.mxu0 %v81
    %v100 = vpop.f32.mrf.mxu0
    %v101 = vadd.f32 0.0, %v100
    %102 = vdwg.mxu0
    %v104 = vrot.slane %v101, 1
    %v107 = vadd.f32 %v70, %v101
    %v108 = vadd.f32 %v73, %v104
    %v109 = vtanh.pop %v107
    %v110 = vtanh.pop %v108
    %vm111 = vcmask 253952
    %112 = vst.msk [vmem:[#allocation2] sm:$0x1] %vm111, %v109
    %113 = vst.msk [vmem:[#allocation2 + $0x8] sm:$0x1] %vm111, %v110
    %v116 = vrot.slane %v110, 7
    %vm117 = vcmask 1041409
    %v118 = vsel %vm117, %v116, %v109
    %v119 = vsel %vm79, %v118, 0
    %121 = vmatpush.msra.mxu0 0.0
    %122 = vmatpush.msra.mxu0 0.0
    %123 = vmatpush.msra.mxu0 0.0
    %124 = vmatpush.msra.mxu0 0.0
    %125 = vmatpush.msra.mxu0 0.0
    %126 = vmatpush.msra.mxu0 0.0
    %127 = vmatpush.msra.mxu0 0.0
    %128 = vmatpush.msra.mxu0 0.0
    %129 = vmatpush.msra.mxu0 0.0
    %130 = vmatpush.msra.mxu0 0.0
    %131 = vmatpush.msra.mxu0 0.0
    %132 = vmatpush.msra.mxu0 0.0
    %133 = vmatpush.msra.mxu0 %v78
    %134 = vmatpush.msra.mxu0 %v77
    %135 = vmatpush.msra.mxu0 %v76
    %136 = vmatpush.msra.mxu0 %v75
    %137 = vmatmul.f32.gmra.mxu0 %v119
    %v138 = vpop.f32.mrf.mxu0
    %v139 = vadd.f32 0.0, %v138
    %140 = vdwg.mxu0
    %v142 = vrot.slane %v139, 7
    %v145 = vadd.f32 %v70, %v142
    %v146 = vadd.f32 %v73, %v139
    %v147 = vtanh.pop %v145
    %v148 = vtanh.pop %v146
    %vm149 = vcmask 254977
    %150 = vst.msk [vmem:[#allocation2] sm:$0x2] %vm149, %v147
    %151 = vst.msk [vmem:[#allocation2 + $0x8] sm:$0x2] %vm149, %v148
    %v154 = vrot.slane %v147, 1
    %v155 = vsel %vm117, %v148, %v154
    %v156 = vsel %vm79, %v155, 0
    %158 = vmatpush.msra.mxu0 0.0
    %159 = vmatpush.msra.mxu0 0.0
    %160 = vmatpush.msra.mxu0 0.0
    %161 = vmatpush.msra.mxu0 0.0
    %162 = vmatpush.msra.mxu0 0.0
    %163 = vmatpush.msra.mxu0 0.0
    %164 = vmatpush.msra.mxu0 0.0
    %165 = vmatpush.msra.mxu0 0.0
    %166 = vmatpush.msra.mxu0 0.0
    %167 = vmatpush.msra.mxu0 0.0
    %168 = vmatpush.msra.mxu0 0.0
    %169 = vmatpush.msra.mxu0 0.0
    %170 = vmatpush.msra.mxu0 %v78
    %171 = vmatpush.msra.mxu0 %v77
    %172 = vmatpush.msra.mxu0 %v76
    %173 = vmatpush.msra.mxu0 %v75
    %174 = vmatmul.f32.gmra.mxu0 %v156
    %v175 = vpop.f32.mrf.mxu0
    %v176 = vadd.f32 0.0, %v175
    %177 = vdwg.mxu0
    %v179 = vrot.slane %v176, 6
    %v180 = vrot.slane %v176, 7
    %v183 = vadd.f32 %v70, %v179
    %v184 = vadd.f32 %v73, %v180
    %v185 = vtanh.pop %v183
    %v186 = vtanh.pop %v184
    %vm187 = vcmask 256002
    %188 = vst.msk [vmem:[#allocation2] sm:$0x4] %vm187, %v185
    %189 = vst.msk [vmem:[#allocation2 + $0x8] sm:$0x4] %vm187, %v186
    %v192 = vrot.slane %v185, 2
    %v193 = vrot.slane %v186, 1
    %v194 = vsel %vm117, %v193, %v192
    %v195 = vsel %vm79, %v194, 0
    %197 = vmatpush.msra.mxu0 0.0
    %198 = vmatpush.msra.mxu0 0.0
    %199 = vmatpush.msra.mxu0 0.0
    %200 = vmatpush.msra.mxu0 0.0
    %201 = vmatpush.msra.mxu0 0.0
    %202 = vmatpush.msra.mxu0 0.0
    %203 = vmatpush.msra.mxu0 0.0
    %204 = vmatpush.msra.mxu0 0.0
    %205 = vmatpush.msra.mxu0 0.0
    %206 = vmatpush.msra.mxu0 0.0
    %207 = vmatpush.msra.mxu0 0.0
    %208 = vmatpush.msra.mxu0 0.0
    %209 = vmatpush.msra.mxu0 %v78
    %210 = vmatpush.msra.mxu0 %v77
    %211 = vmatpush.msra.mxu0 %v76
    %212 = vmatpush.msra.mxu0 %v75
    %213 = vmatmul.f32.gmra.mxu0 %v195
    %v214 = vpop.f32.mrf.mxu0
    %v215 = vadd.f32 0.0, %v214
    %216 = vdwg.mxu0
    %v218 = vrot.slane %v215, 5
    %v219 = vrot.slane %v215, 6
    %v222 = vadd.f32 %v70, %v218
    %v223 = vadd.f32 %v73, %v219
    %v224 = vtanh.pop %v222
    %v225 = vtanh.pop %v223
    %vm226 = vcmask 257027
    %227 = vst.msk [vmem:[#allocation2] sm:$0x8] %vm226, %v224
    %228 = vst.msk [vmem:[#allocation2 + $0x8] sm:$0x8] %vm226, %v225
    %v231 = vrot.slane %v224, 3
    %v232 = vrot.slane %v225, 2
    %v233 = vsel %vm117, %v232, %v231
    %v234 = vsel %vm79, %v233, 0
    %236 = vmatpush.msra.mxu0 0.0
    %237 = vmatpush.msra.mxu0 0.0
    %238 = vmatpush.msra.mxu0 0.0
    %239 = vmatpush.msra.mxu0 0.0
    %240 = vmatpush.msra.mxu0 0.0
    %241 = vmatpush.msra.mxu0 0.0
    %242 = vmatpush.msra.mxu0 0.0
    %243 = vmatpush.msra.mxu0 0.0
    %244 = vmatpush.msra.mxu0 0.0
    %245 = vmatpush.msra.mxu0 0.0
    %246 = vmatpush.msra.mxu0 0.0
    %247 = vmatpush.msra.mxu0 0.0
    %248 = vmatpush.msra.mxu0 %v78
    %249 = vmatpush.msra.mxu0 %v77
    %250 = vmatpush.msra.mxu0 %v76
    %251 = vmatpush.msra.mxu0 %v75
    %252 = vmatmul.f32.gmra.mxu0 %v234
    %v253 = vpop.f32.mrf.mxu0
    %v254 = vadd.f32 0.0, %v253
    %255 = vdwg.mxu0
    %v257 = vrot.slane %v254, 4
    %v258 = vrot.slane %v254, 5
    %v261 = vadd.f32 %v70, %v257
    %v262 = vadd.f32 %v73, %v258
    %v263 = vtanh.pop %v261
    %v264 = vtanh.pop %v262
    %vm265 = vcmask 258052
    %266 = vst.msk [vmem:[#allocation2] sm:$0x10] %vm265, %v263
    %267 = vst.msk [vmem:[#allocation2 + $0x8] sm:$0x10] %vm265, %v264
    %v270 = vrot.slane %v263, 4
    %v271 = vrot.slane %v264, 3
    %v272 = vsel %vm117, %v271, %v270
    %v273 = vsel %vm79, %v272, 0
    %275 = vmatpush.msra.mxu0 0.0
    %276 = vmatpush.msra.mxu0 0.0
    %277 = vmatpush.msra.mxu0 0.0
    %278 = vmatpush.msra.mxu0 0.0
    %279 = vmatpush.msra.mxu0 0.0
    %280 = vmatpush.msra.mxu0 0.0
    %281 = vmatpush.msra.mxu0 0.0
    %282 = vmatpush.msra.mxu0 0.0
    %283 = vmatpush.msra.mxu0 0.0
    %284 = vmatpush.msra.mxu0 0.0
    %285 = vmatpush.msra.mxu0 0.0
    %286 = vmatpush.msra.mxu0 0.0
    %287 = vmatpush.msra.mxu0 %v78
    %288 = vmatpush.msra.mxu0 %v77
    %289 = vmatpush.msra.mxu0 %v76
    %290 = vmatpush.msra.mxu0 %v75
    %291 = vmatmul.f32.gmra.mxu0 %v273
    %v292 = vpop.f32.mrf.mxu0
    %v293 = vadd.f32 0.0, %v292
    %294 = vdwg.mxu0
    %v296 = vrot.slane %v293, 3
    %v297 = vrot.slane %v293, 4
    %v300 = vadd.f32 %v70, %v296
    %v301 = vadd.f32 %v73, %v297
    %v302 = vtanh.pop %v300
    %v303 = vtanh.pop %v301
    %vm304 = vcmask 259077
    %305 = vst.msk [vmem:[#allocation2] sm:$0x20] %vm304, %v302
    %306 = vst.msk [vmem:[#allocation2 + $0x8] sm:$0x20] %vm304, %v303
    %v309 = vrot.slane %v302, 5
    %v310 = vrot.slane %v303, 4
    %v311 = vsel %vm117, %v310, %v309
    %v312 = vsel %vm79, %v311, 0
    %314 = vmatpush.msra.mxu0 0.0
    %315 = vmatpush.msra.mxu0 0.0
    %316 = vmatpush.msra.mxu0 0.0
    %317 = vmatpush.msra.mxu0 0.0
    %318 = vmatpush.msra.mxu0 0.0
    %319 = vmatpush.msra.mxu0 0.0
    %320 = vmatpush.msra.mxu0 0.0
    %321 = vmatpush.msra.mxu0 0.0
    %322 = vmatpush.msra.mxu0 0.0
    %323 = vmatpush.msra.mxu0 0.0
    %324 = vmatpush.msra.mxu0 0.0
    %325 = vmatpush.msra.mxu0 0.0
    %326 = vmatpush.msra.mxu0 %v78
    %327 = vmatpush.msra.mxu0 %v77
    %328 = vmatpush.msra.mxu0 %v76
    %329 = vmatpush.msra.mxu0 %v75
    %330 = vmatmul.f32.gmra.mxu0 %v312
    %v331 = vpop.f32.mrf.mxu0
    %v332 = vadd.f32 0.0, %v331
    %333 = vdwg.mxu0
    %v335 = vrot.slane %v332, 2
    %v336 = vrot.slane %v332, 3
    %v339 = vadd.f32 %v70, %v335
    %v340 = vadd.f32 %v73, %v336
    %v341 = vtanh.pop %v339
    %v342 = vtanh.pop %v340
    %vm343 = vcmask 260102
    %344 = vst.msk [vmem:[#allocation2] sm:$0x40] %vm343, %v341
    %345 = vst.msk [vmem:[#allocation2 + $0x8] sm:$0x40] %vm343, %v342
    %v348 = vrot.slane %v341, 6
    %v349 = vrot.slane %v342, 5
    %v350 = vsel %vm117, %v349, %v348
    %v351 = vsel %vm79, %v350, 0
    %353 = vmatpush.msra.mxu0 0.0
    %354 = vmatpush.msra.mxu0 0.0
    %355 = vmatpush.msra.mxu0 0.0
    %356 = vmatpush.msra.mxu0 0.0
    %357 = vmatpush.msra.mxu0 0.0
    %358 = vmatpush.msra.mxu0 0.0
    %359 = vmatpush.msra.mxu0 0.0
    %360 = vmatpush.msra.mxu0 0.0
    %361 = vmatpush.msra.mxu0 0.0
    %362 = vmatpush.msra.mxu0 0.0
    %363 = vmatpush.msra.mxu0 0.0
    %364 = vmatpush.msra.mxu0 0.0
    %365 = vmatpush.msra.mxu0 %v78
    %366 = vmatpush.msra.mxu0 %v77
    %367 = vmatpush.msra.mxu0 %v76
    %368 = vmatpush.msra.mxu0 %v75
    %369 = vmatmul.f32.gmra.mxu0 %v351
    %v370 = vpop.f32.mrf.mxu0
    %v371 = vadd.f32 0.0, %v370
    %372 = vdwg.mxu0
    %v374 = vrot.slane %v371, 1
    %v375 = vrot.slane %v371, 2
    %v378 = vadd.f32 %v70, %v374
    %v379 = vadd.f32 %v73, %v375
    %v380 = vtanh.pop %v378
    %v381 = vtanh.pop %v379
    %vm382 = vcmask 261127
    %383 = vst.msk [vmem:[#allocation2] sm:$0x80] %vm382, %v380
    %384 = vst.msk [vmem:[#allocation2 + $0x8] sm:$0x80] %vm382, %v381
    %v385 = vld [vmem:[#allocation2] sm:$0xff]
    %v386 = vld [vmem:[#allocation2 + $0x8] sm:$0xff]
    %v387 = vld [vmem:[%s5] sm:$0xff]
    %v388 = vld [vmem:[%s5 + $0x8] sm:$0xff]
    %v389 = vld [vmem:[%s5 + $0x10] sm:$0xff]
    %v390 = vld [vmem:[%s5 + $0x18] sm:$0xff]
    %v391 = vld [vmem:[%s6] sm:$0x1]
    %v393 = vperm.slane %v391, 0
    %v396 = vsel %vm79, %v385, 0
    %v399 = vsel %vm79, %v386, 0
    %401 = vmatpush.msra.mxu0 0.0
    %402 = vmatpush.msra.mxu0 0.0
    %403 = vmatpush.msra.mxu0 0.0
    %404 = vmatpush.msra.mxu0 0.0
    %405 = vmatpush.msra.mxu0 0.0
    %406 = vmatpush.msra.mxu0 0.0
    %407 = vmatpush.msra.mxu0 0.0
    %408 = vmatpush.msra.mxu0 0.0
    %409 = vmatpush.msra.mxu0 0.0
    %410 = vmatpush.msra.mxu0 0.0
    %411 = vmatpush.msra.mxu0 0.0
    %412 = vmatpush.msra.mxu0 0.0
    %413 = vmatpush.msra.mxu0 %v390
    %414 = vmatpush.msra.mxu0 %v389
    %415 = vmatpush.msra.mxu0 %v388
    %416 = vmatpush.msra.mxu0 %v387
    %417 = vmatmul.f32.gmra.mxu0 %v396
    %v418 = vpop.f32.mrf.mxu0
    %v419 = vadd.f32 %v393, %v418
    %420 = vmatmul.f32.gmra.mxu0 %v399
    %v421 = vpop.f32.mrf.mxu0
    %v422 = vadd.f32 %v393, %v421
    %423 = vdwg.mxu0
    %v424 = vld [vmem:[%s1] sm:$0xff]
    %v425 = vld [vmem:[%s1 + $0x8] sm:$0xff]
    %v426 = vmul.f32 %v419, 0.5
    %v427 = vmul.f32 %v422, 0.5
    %v428 = vmul.f32 %v426, 1.442695
    %v429 = vpow.pop %v428
    %v430 = vmul.f32 %v427, 1.442695
    %v431 = vpow.pop %v430
    %434 = vrot.lane.b32.xlu0 %v429, 112
    %v435 = vpop.permute.xlu0 %434
    %436 = vrot.lane.b32.xlu0 %v431, 112
    %v437 = vpop.permute.xlu0 %436
    %v440 = vmul.f32 %v424, %v435
    %v441 = vmul.f32 %v425, %v437
    %v442 = vadd.f32 %v419, %v440
    %v443 = vadd.f32 %v422, %v441
    %vm444 = vcmask 130048
    %445 = vst.msk [vmem:[#allocation3] sm:$0xff] %vm444, %v419
    %446 = vst.msk [vmem:[#allocation3 + $0x8] sm:$0xff] %vm444, %v422
    %449 = vrot.lane.b32.xlu0 %v419, 112
    %v450 = vpop.permute.xlu0 %449
    %451 = vrot.lane.b32.xlu0 %v422, 112
    %v452 = vpop.permute.xlu0 %451
    %455 = vst.msk [vmem:[#allocation5] sm:$0xff] %vm444, %v450
    %456 = vst.msk [vmem:[#allocation5 + $0x8] sm:$0xff] %vm444, %v452
    %457 = vst.msk [vmem:[#allocation7] sm:$0xff] %vm444, %v442
    %458 = vst.msk [vmem:[#allocation7 + $0x8] sm:$0xff] %vm444, %v443
    // Predicated region
    $region30: #{tpu_custom_call.1} parent=1 // pred_check
      _
    $region31: #{tpu_custom_call.1} parent=1 // pred_check_branch
      %460 = sbr.rel (0) target = $region33
    $region32: #{tpu_custom_call.1} parent=1 // pred_region
      %462 = vsyncadd [#allocation4], 0
      %s463 = sshll.u32 [#allocation3], 4
      %s464 = int_to_ptr.vmem [resolvable:$true] %s463
      %s465 = sshll.u32 %s7, 4
      %s466 = int_to_ptr.hbm [resolvable:$true] %s465
      %471 = dma.vmem_to_hbm [thread:$0]  %s464, 256, %s466, [#allocation4], 128, 128, 8
    $region33: #{tpu_custom_call.1} parent=1 // pred_fallthru
      _
    // Predicated region
    $region34: #{tpu_custom_call.1} parent=1 // pred_check
      _
    $region35: #{tpu_custom_call.1} parent=1 // pred_check_branch
      %473 = sbr.rel (0) target = $region37
    $region36: #{tpu_custom_call.1} parent=1 // pred_region
      %475 = vsyncadd [#allocation6], 0
      %s476 = sshll.u32 [#allocation5], 4
      %s477 = int_to_ptr.vmem [resolvable:$true] %s476
      %s478 = sshll.u32 %s8, 4
      %s479 = int_to_ptr.hbm [resolvable:$true] %s478
      %484 = dma.vmem_to_hbm [thread:$0]  %s477, 256, %s479, [#allocation6], 128, 128, 8
    $region37: #{tpu_custom_call.1} parent=1 // pred_fallthru
      _
    // Predicated region
    $region38: #{tpu_custom_call.1} parent=1 // pred_check
      _
    $region39: #{tpu_custom_call.1} parent=1 // pred_check_branch
      %486 = sbr.rel (0) target = $region41
    $region40: #{tpu_custom_call.1} parent=1 // pred_region
      %488 = vsyncadd [#allocation6], 0
      %s489 = sshll.u32 [#allocation7], 4
      %s490 = int_to_ptr.vmem [resolvable:$true] %s489
      %s491 = sshll.u32 %s9, 4
      %s492 = int_to_ptr.hbm [resolvable:$true] %s491
      %497 = dma.vmem_to_hbm [thread:$0]  %s490, 256, %s492, [#allocation6], 128, 128, 8
    $region41: #{tpu_custom_call.1} parent=1 // pred_fallthru
      _
    // Predicated region
    $region42: #{tpu_custom_call.1} parent=1 // pred_check
      _
    $region43: #{tpu_custom_call.1} parent=1 // pred_check_branch
      %499 = sbr.rel (0) target = $region45
    $region44: #{tpu_custom_call.1} parent=1 // pred_region
      %501 = dma.done [#allocation4], 256
    $region45: #{tpu_custom_call.1} parent=1 // pred_fallthru
      _
    // Predicated region
    $region46: #{tpu_custom_call.1} parent=1 // pred_check
      _
    $region47: #{tpu_custom_call.1} parent=1 // pred_check_branch
      %503 = sbr.rel (0) target = $region49
    $region48: #{tpu_custom_call.1} parent=1 // pred_region
      %505 = dma.done [#allocation6], 256
    $region49: #{tpu_custom_call.1} parent=1 // pred_fallthru
      _
    // Predicated region
    $region50: #{tpu_custom_call.1} parent=1 // pred_check
      _
    $region51: #{tpu_custom_call.1} parent=1 // pred_check_branch
      %507 = sbr.rel (0) target = $region53
    $region52: #{tpu_custom_call.1} parent=1 // pred_region
      %509 = dma.done [#allocation6], 256
    $region53: #{tpu_custom_call.1} parent=1 // pred_fallthru
      _
    %510 = vsyncpa [#allocation4], 1
    %511 = vsyncpa [#allocation6], 1

</llo_original>
